<compile_context>
chip_gen: v7x
topology: tpu7x:2x2x1
jax: 0.10.0
libtpu: 0.0.40
codegen_flags: <defaults>
</compile_context>

<pallas_src>
import jax
import jax.numpy as jnp
from jax import lax
from jax.experimental import pallas as pl
from jax.experimental.pallas import tpu as pltpu


def qnet_kernel(x_ref, a_ref, w1x_ref, w1a_ref, b1_ref,
                w2_ref, b2_ref, w3_ref, b3_ref, out_ref):
    """One batch tile of the fused 3-layer MLP Q-function (lane-dense out)."""
    # Layer 1 (concat-free):  [x | a] @ W1  ==  x @ W1[:obs] + a @ W1[obs:]
    h1 = (jnp.dot(x_ref[...], w1x_ref[...], preferred_element_type=jnp.float32)
          + jnp.dot(a_ref[...], w1a_ref[...], preferred_element_type=jnp.float32)
          + b1_ref[...])
    h1 = jnp.maximum(h1, 0.0)

    # Layer 2: Linear + ReLU (MXU).
    h2 = jnp.dot(h1, w2_ref[...], preferred_element_type=jnp.float32) + b2_ref[...]
    h2 = jnp.maximum(h2, 0.0)

    # Head (out_features == 1), lane-dense:
    #   q_row[0, b] = sum_k w3[k] * h2[b, k]   ->   (1, tb)
    # Computed as W3_row @ h2^T via dot_general contracting both minor dims
    # (same pattern as the q @ k^T attention matmul); MXU has huge slack here
    # and the batch stays in the lane dimension for an unmasked dense store.
    q_row = lax.dot_general(
        w3_ref[...], h2, (((1,), (1,)), ((), ())),
        preferred_element_type=jnp.float32) + b3_ref[0, 0]
    out_ref[...] = q_row[None].astype(out_ref.dtype)   # (1, 1, tb)


def _num_tensorcores_per_device():
    """Best-effort TensorCores-per-device (v7x and v4/v5p megacore have 2)."""
    try:
        kind = jax.devices()[0].device_kind.lower()
    except Exception:
        return 1
    return 2 if any(t in kind for t in ("v7", "tpu7", "v4", "v5p")) else 1


def _choose_batch_tile(B, *, n_cores=1, tb_cap=4096, min_rows_to_split=1024):
    """Pick (tb, n_tiles).

    Prefer one big full-extent tile (per-grid-step overhead ~0.35 us dominates
    tiny tiles); split only to (a) cover both TensorCores on 2-core parts when
    the batch is large enough, or (b) respect the VMEM cap. 4096 rows is
    ~12 MiB of double-buffered, lane-padded f32 activations; raise tb_cap
    (and vmem_limit_bytes) only if B is routinely much larger.
    """
    n_tiles = pl.cdiv(B, tb_cap)
    if n_cores > 1 and B >= min_rows_to_split:
        n_tiles = max(n_tiles, n_cores)
    if n_tiles <= 1:
        return B, 1                     # full-extent block, no alignment needed
    tb = ((pl.cdiv(B, n_tiles) + 7) // 8) * 8   # sublane multiple for tiled blocks
    return tb, pl.cdiv(B, tb)


def prepare_kernel_params(params, obs_dim):
    """One-time preprocessing, hoisted out of the forward path.

    Splits W1 for the concat-free first layer, lays W3 out as a (1, H2) row
    for the lane-dense head and b3 as a (1, 1) SMEM scalar.
    """
    w1, b1, w2, b2, w3, b3 = params
    return (w1[:obs_dim], w1[obs_dim:], b1, w2, b2,
            w3.reshape(1, -1), b3.reshape(1, 1))


def qnetwork_forward(x, a, kparams, *, tb_cap=4096, n_cores=None):
    """Q(s, a) forward pass. x: (B, obs_dim), a: (B, act_dim) -> (B, 1)."""
    w1x, w1a, b1, w2, b2, w3_row, b3_s = kparams
    B, obs_dim = x.shape
    act_dim = a.shape[-1]
    H1 = w1x.shape[1]
    H2 = w2.shape[1]

    if n_cores is None:
        n_cores = _num_tensorcores_per_device()
    tb, nb = _choose_batch_tile(B, n_cores=n_cores, tb_cap=tb_cap)

    in_dim = obs_dim + act_dim
    cost = pl.CostEstimate(
        flops=2 * B * (in_dim * H1 + H1 * H2 + H2),
        transcendentals=0,
        bytes_accessed=4 * (B * (in_dim + 1)
                            + in_dim * H1 + H1 + H1 * H2 + 2 * H2 + 1),
    )

    resident = lambda shape: pl.BlockSpec(shape, lambda i: (0, 0))

    out = pl.pallas_call(
        qnet_kernel,
        out_shape=jax.ShapeDtypeStruct((nb, 1, tb), jnp.float32),
        grid=(nb,),
        in_specs=[
            pl.BlockSpec((tb, obs_dim), lambda i: (i, 0)),      # x tile
            pl.BlockSpec((tb, act_dim), lambda i: (i, 0)),      # a tile
            resident((obs_dim, H1)),                            # W1[:obs]
            resident((act_dim, H1)),                            # W1[obs:]
            resident((1, H1)),                                  # b1
            resident((H1, H2)),                                 # W2
            resident((1, H2)),                                  # b2
            resident((1, H2)),                                  # W3 row
            pl.BlockSpec(memory_space=pltpu.MemorySpace.SMEM),  # b3 scalar
        ],
        out_specs=pl.BlockSpec((1, 1, tb), lambda i: (i, 0, 0)),
        compiler_params=pltpu.CompilerParams(
            dimension_semantics=("parallel",)),
        cost_estimate=cost,
    )(x, a, w1x, w1a, b1, w2, b2, w3_row, b3_s)

    # (nb, 1, tb) lane-dense rows -> (B, 1); any ragged-edge garbage rows from
    # partial edge blocks land past B and are sliced off here.
    return out.reshape(nb * tb)[:B].reshape(B, 1)


def init_params(key, input_dim, hidden_sizes, output_dim=1):
    """PyTorch-Linear-style init: U(-1/sqrt(fan_in), 1/sqrt(fan_in)).
    Weights stored as (in_features, out_features)."""
    dims = [input_dim] + list(hidden_sizes) + [output_dim]
    params = []
    for d_in, d_out in zip(dims[:-1], dims[1:]):
        key, kw, kb = jax.random.split(key, 3)
        bound = 1.0 / jnp.sqrt(d_in)
        w = jax.random.uniform(kw, (d_in, d_out), jnp.float32, -bound, bound)
        b = jax.random.uniform(kb, (1, d_out), jnp.float32, -bound, bound)
        params.extend([w, b])
    return tuple(params)


def reference_forward(x, a, params):
    """Plain-JAX reference (same math as the PyTorch forward)."""
    w1, b1, w2, b2, w3, b3 = params
    inp = jnp.concatenate([x, a], axis=-1)
    h = jnp.maximum(inp @ w1 + b1, 0.0)
    h = jnp.maximum(h @ w2 + b2, 0.0)
    return h @ w3 + b3


if __name__ == "__main__":
    # Synthetic env dims: obs_dim=16, act_dim=8, hidden_sizes=[32, 32]
    B, OBS_DIM, ACT_DIM = 8, 16, 8
    HIDDEN = [32, 32]

    key = jax.random.PRNGKey(0)
    kx, ka, kp, kx2, ka2 = jax.random.split(key, 5)
    x = jax.random.normal(kx, (B, OBS_DIM), jnp.float32)
    a = jax.random.normal(ka, (B, ACT_DIM), jnp.float32)
    params = init_params(kp, OBS_DIM + ACT_DIM, HIDDEN, output_dim=1)
    kparams = prepare_kernel_params(params, OBS_DIM)   # hoisted, done once

    # Small batch: single full-extent tile.
    q = jax.block_until_ready(qnetwork_forward(x, a, kparams))
    ref = reference_forward(x, a, params)
    assert q.shape == (B, 1)
    assert jnp.allclose(q, ref, atol=1e-5, rtol=1e-5)

    # Ragged batch (300 rows): still a single full-extent tile, no wrapper pad.
    B2 = 300
    x2 = jax.random.normal(kx2, (B2, OBS_DIM), jnp.float32)
    a2 = jax.random.normal(ka2, (B2, ACT_DIM), jnp.float32)
    q2 = jax.block_until_ready(qnetwork_forward(x2, a2, kparams))
    ref2 = reference_forward(x2, a2, params)
    assert q2.shape == (B2, 1)
    assert jnp.allclose(q2, ref2, atol=1e-5, rtol=1e-5)

    # Multi-tile path with a partial edge block (tiny tb_cap ONLY to exercise
    # the non-divisible grid handling; the perf default is one tile per core).
    q3 = jax.block_until_ready(qnetwork_forward(x2, a2, kparams, tb_cap=128))
    assert q3.shape == (B2, 1)
    assert jnp.allclose(q3, ref2, atol=1e-5, rtol=1e-5)

    print("KERNEL_OK")
</pallas_src>

<mosaic_0001>
module attributes {stable_mosaic.version = 11 : i64} {
  func.func @qnet_kernel(%arg0: i32, %arg1: memref<8x16xf32, #tpu.memory_space<vmem>>, %arg2: memref<8x8xf32, #tpu.memory_space<vmem>>, %arg3: memref<16x32xf32, #tpu.memory_space<vmem>>, %arg4: memref<8x32xf32, #tpu.memory_space<vmem>>, %arg5: memref<1x32xf32, #tpu.memory_space<vmem>>, %arg6: memref<32x32xf32, #tpu.memory_space<vmem>>, %arg7: memref<1x32xf32, #tpu.memory_space<vmem>>, %arg8: memref<1x32xf32, #tpu.memory_space<vmem>>, %arg9: memref<1x1xf32, #tpu.memory_space<smem>>, %arg10: memref<1x1x8xf32, #tpu.memory_space<vmem>>) attributes {dimension_semantics = [#tpu.dimension_semantics<parallel>], iteration_bounds = array<i64: 1>, scalar_prefetch = 0 : i64, scratch_operands = 0 : i64, tpu.core_type = #tpu.core_type<tc>, window_params = [{transform_indices = @transform_0, window_bounds = array<i64: 8, 16>}, {transform_indices = @transform_1, window_bounds = array<i64: 8, 8>}, {pipeline_mode = #tpu.pipeline_mode<synchronous>, transform_indices = @transform_2, window_bounds = array<i64: 16, 32>}, {pipeline_mode = #tpu.pipeline_mode<synchronous>, transform_indices = @transform_3, window_bounds = array<i64: 8, 32>}, {pipeline_mode = #tpu.pipeline_mode<synchronous>, transform_indices = @transform_4, window_bounds = array<i64: 1, 32>}, {pipeline_mode = #tpu.pipeline_mode<synchronous>, transform_indices = @transform_5, window_bounds = array<i64: 32, 32>}, {pipeline_mode = #tpu.pipeline_mode<synchronous>, transform_indices = @transform_6, window_bounds = array<i64: 1, 32>}, {pipeline_mode = #tpu.pipeline_mode<synchronous>, transform_indices = @transform_7, window_bounds = array<i64: 1, 32>}, {transform_indices = @transform_8, window_bounds = array<i64: 1, 1>}, {transform_indices = @transform_9, window_bounds = array<i64: 1, 1, 8>}]} {
    %c0 = arith.constant 0 : index
    %c0_0 = arith.constant 0 : index
    %0 = vector.load %arg1[%c0, %c0_0] : memref<8x16xf32, #tpu.memory_space<vmem>>, vector<8x16xf32>
    %c0_1 = arith.constant 0 : index
    %c0_2 = arith.constant 0 : index
    %1 = vector.load %arg3[%c0_1, %c0_2] : memref<16x32xf32, #tpu.memory_space<vmem>>, vector<16x32xf32>
    %cst = arith.constant dense<0.000000e+00> : vector<8x32xf32>
    %2 = tpu.matmul %0, %1, %cst {dimension_numbers = #tpu.dot_dimension_numbers<[1], [0], [0], [1], [0, 0, 1, 1], [], []>} : vector<8x16xf32>, vector<16x32xf32>, vector<8x32xf32> -> vector<8x32xf32>
    %c0_3 = arith.constant 0 : index
    %c0_4 = arith.constant 0 : index
    %3 = vector.load %arg2[%c0_3, %c0_4] : memref<8x8xf32, #tpu.memory_space<vmem>>, vector<8x8xf32>
    %c0_5 = arith.constant 0 : index
    %c0_6 = arith.constant 0 : index
    %4 = vector.load %arg4[%c0_5, %c0_6] : memref<8x32xf32, #tpu.memory_space<vmem>>, vector<8x32xf32>
    %cst_7 = arith.constant dense<0.000000e+00> : vector<8x32xf32>
    %5 = tpu.matmul %3, %4, %cst_7 {dimension_numbers = #tpu.dot_dimension_numbers<[1], [0], [0], [1], [0, 0, 1, 1], [], []>} : vector<8x8xf32>, vector<8x32xf32>, vector<8x32xf32> -> vector<8x32xf32>
    %6 = arith.addf %2, %5 : vector<8x32xf32>
    %c0_8 = arith.constant 0 : index
    %c0_9 = arith.constant 0 : index
    %7 = vector.load %arg5[%c0_8, %c0_9] : memref<1x32xf32, #tpu.memory_space<vmem>>, vector<1x32xf32>
    %8 = vector.broadcast %7 : vector<1x32xf32> to vector<8x32xf32>
    %9 = arith.addf %6, %8 : vector<8x32xf32>
    %cst_10 = arith.constant 0.000000e+00 : f32
    %10 = vector.broadcast %cst_10 : f32 to vector<8x32xf32>
    %11 = arith.maximumf %9, %10 : vector<8x32xf32>
    %c0_11 = arith.constant 0 : index
    %c0_12 = arith.constant 0 : index
    %12 = vector.load %arg6[%c0_11, %c0_12] : memref<32x32xf32, #tpu.memory_space<vmem>>, vector<32x32xf32>
    %cst_13 = arith.constant dense<0.000000e+00> : vector<8x32xf32>
    %13 = tpu.matmul %11, %12, %cst_13 {dimension_numbers = #tpu.dot_dimension_numbers<[1], [0], [0], [1], [0, 0, 1, 1], [], []>} : vector<8x32xf32>, vector<32x32xf32>, vector<8x32xf32> -> vector<8x32xf32>
    %c0_14 = arith.constant 0 : index
    %c0_15 = arith.constant 0 : index
    %14 = vector.load %arg7[%c0_14, %c0_15] : memref<1x32xf32, #tpu.memory_space<vmem>>, vector<1x32xf32>
    %15 = vector.broadcast %14 : vector<1x32xf32> to vector<8x32xf32>
    %16 = arith.addf %13, %15 : vector<8x32xf32>
    %cst_16 = arith.constant 0.000000e+00 : f32
    %17 = vector.broadcast %cst_16 : f32 to vector<8x32xf32>
    %18 = arith.maximumf %16, %17 : vector<8x32xf32>
    %c0_17 = arith.constant 0 : index
    %c0_18 = arith.constant 0 : index
    %19 = vector.load %arg8[%c0_17, %c0_18] : memref<1x32xf32, #tpu.memory_space<vmem>>, vector<1x32xf32>
    %cst_19 = arith.constant dense<0.000000e+00> : vector<1x8xf32>
    %20 = tpu.matmul %19, %18, %cst_19 {dimension_numbers = #tpu.dot_dimension_numbers<[1], [1], [0], [0], [0, 0, 1, 0], [], []>} : vector<1x32xf32>, vector<8x32xf32>, vector<1x8xf32> -> vector<1x8xf32>
    %c0_20 = arith.constant 0 : index
    %c0_21 = arith.constant 0 : index
    %21 = memref.load %arg9[%c0_20, %c0_21] : memref<1x1xf32, #tpu.memory_space<smem>>
    %22 = vector.broadcast %21 : f32 to vector<1x8xf32>
    %23 = arith.addf %20, %22 : vector<1x8xf32>
    %24 = vector.shape_cast %23 : vector<1x8xf32> to vector<1x1x8xf32>
    %c0_22 = arith.constant 0 : index
    %c0_23 = arith.constant 0 : index
    %c0_24 = arith.constant 0 : index
    %25 = vector.load %arg10[%c0_22, %c0_23, %c0_24] : memref<1x1x8xf32, #tpu.memory_space<vmem>>, vector<1x1x8xf32>
    tpu.vector_store %arg10[%c0_22, %c0_23, %c0_24], %24 {strides = array<i32>} : memref<1x1x8xf32, #tpu.memory_space<vmem>>, vector<1x1x8xf32>,
    return
  }
  func.func @transform_0(%arg0: i32) -> (i32, i32) {
    %c0_i32 = arith.constant 0 : i32
    %c0_i32_0 = arith.constant 0 : i32
    return %arg0, %c0_i32 : i32, i32
  }
  func.func @transform_1(%arg0: i32) -> (i32, i32) {
    %c0_i32 = arith.constant 0 : i32
    %c0_i32_0 = arith.constant 0 : i32
    return %arg0, %c0_i32 : i32, i32
  }
  func.func @transform_2(%arg0: i32) -> (i32, i32) {
    %c0_i32 = arith.constant 0 : i32
    %c0_i32_0 = arith.constant 0 : i32
    %c0_i32_1 = arith.constant 0 : i32
    return %c0_i32, %c0_i32_0 : i32, i32
  }
  func.func @transform_3(%arg0: i32) -> (i32, i32) {
    %c0_i32 = arith.constant 0 : i32
    %c0_i32_0 = arith.constant 0 : i32
    %c0_i32_1 = arith.constant 0 : i32
    return %c0_i32, %c0_i32_0 : i32, i32
  }
  func.func @transform_4(%arg0: i32) -> (i32, i32) {
    %c0_i32 = arith.constant 0 : i32
    %c0_i32_0 = arith.constant 0 : i32
    %c0_i32_1 = arith.constant 0 : i32
    return %c0_i32, %c0_i32_0 : i32, i32
  }
  func.func @transform_5(%arg0: i32) -> (i32, i32) {
    %c0_i32 = arith.constant 0 : i32
    %c0_i32_0 = arith.constant 0 : i32
    %c0_i32_1 = arith.constant 0 : i32
    return %c0_i32, %c0_i32_0 : i32, i32
  }
  func.func @transform_6(%arg0: i32) -> (i32, i32) {
    %c0_i32 = arith.constant 0 : i32
    %c0_i32_0 = arith.constant 0 : i32
    %c0_i32_1 = arith.constant 0 : i32
    return %c0_i32, %c0_i32_0 : i32, i32
  }
  func.func @transform_7(%arg0: i32) -> (i32, i32) {
    %c0_i32 = arith.constant 0 : i32
    %c0_i32_0 = arith.constant 0 : i32
    %c0_i32_1 = arith.constant 0 : i32
    return %c0_i32, %c0_i32_0 : i32, i32
  }
  func.func @transform_8(%arg0: i32) -> (i32, i32) {
    %c0_i32 = arith.constant 0 : i32
    %c0_i32_0 = arith.constant 0 : i32
    %c0_i32_1 = arith.constant 0 : i32
    return %c0_i32, %c0_i32_0 : i32, i32
  }
  func.func @transform_9(%arg0: i32) -> (i32, i32, i32) {
    %c0_i32 = arith.constant 0 : i32
    %c0_i32_0 = arith.constant 0 : i32
    %c0_i32_1 = arith.constant 0 : i32
    return %arg0, %c0_i32, %c0_i32_0 : i32, i32, i32
  }
}

</mosaic_0001>

<llo_original>
// kernel: tpu_custom_call.1
$region0: #{tpu_custom_call.1}
  #allocation0 [shape = 'u32[]', space=smem, size = 0x4, offset = 0x4, fixed_abs, tag = 'smem constant byte address 0x4 - core index']
  #allocation1 [shape = 'u32[144,128]{1,0:T(1,128)}', space=vmem, size = 0x12000, scoped, tag = 'internal scratch']
  #allocation2 [shape = 'f32[1,1]{1,0:T(1,128)S(6)}', space=smem, size = 0x200, scoped, tag = 'scoped memory for tpu_custom_call.1']
  %s0 = inlined_call_operand.hbm [shape: f32[8,16], index: 0, kind: input, shape index: {}]
  %s1 = inlined_call_operand.hbm [shape: f32[8,8], index: 1, kind: input, shape index: {}]
  %s2 = inlined_call_operand.hbm [shape: f32[16,32], index: 2, kind: input, shape index: {}]
  %s3 = inlined_call_operand.vmem [shape: f32[8,32], index: 3, kind: input, shape index: {}]
  %s4 = inlined_call_operand.vmem [shape: f32[1,32], index: 4, kind: input, shape index: {}]
  %s5 = inlined_call_operand.hbm [shape: f32[32,32], index: 5, kind: input, shape index: {}]
  %s6 = inlined_call_operand.vmem [shape: f32[1,32], index: 6, kind: input, shape index: {}]
  %s7 = inlined_call_operand.vmem [shape: f32[1,32], index: 7, kind: input, shape index: {}]
  %s8 = inlined_call_operand.<no memory space> [shape: f32[1,1], index: 8, kind: input, shape index: {}]
  %s9 = inlined_call_operand.hbm [shape: f32[1,1,8], index: 9, kind: output, shape index: {}]
  %s10 = sld [smem:[#allocation0]]
  $region62: #{tpu_custom_call.1} parent=0
    _
  %s12 = ssub.s32 1, %s10
  %s13 = scalar_select 0, %s12, %s10
  %14 = sst [smem:[#allocation2]] %s8
  $region1: #{tpu_custom_call.1} parent=0
    #allocation3 [shape = 'u8[4096]{0}', space=vmem, size = 0x1000, scoped, tag = 'input window, operand 0, single buffered']
    #allocation4 [shape = 's32[1]{0}', space=sflag, size = 0x4, scoped, tag = 'scoped memory for tpu_custom_call.1']
    #allocation5 [shape = 's32[1]{0}', space=sflag, size = 0x4, scoped, tag = 'scoped memory for tpu_custom_call.1']
    #allocation6 [shape = 'u8[4096]{0}', space=vmem, size = 0x1000, scoped, tag = 'input window, operand 1, single buffered']
    #allocation7 [shape = 's32[1]{0}', space=sflag, size = 0x4, scoped, tag = 'scoped memory for tpu_custom_call.1']
    #allocation8 [shape = 'u8[8192]{0}', space=vmem, size = 0x2000, scoped, tag = 'input window, operand 2, single buffered']
    #allocation9 [shape = 'u8[16384]{0}', space=vmem, size = 0x4000, scoped, tag = 'input window, operand 5, single buffered']
    #allocation10 [shape = 's32[1]{0}', space=sflag, size = 0x4, scoped, tag = 'scoped memory for tpu_custom_call.1']
    #allocation11 [shape = 'u8[512]{0}', space=vmem, size = 0x400, scoped, tag = 'output window, operand 0, single buffered']
    %15 = vsyncpa [#allocation4], 0
    %16 = vsyncpa [#allocation7], 0
    %17 = vsyncpa [#allocation10], 0
    %18 = vsyncpa [#allocation5], 0
    // Predicated region
    $region2: #{tpu_custom_call.1} parent=1 // pred_check
      _
    $region3: #{tpu_custom_call.1} parent=1 // pred_check_branch
      %20 = sbr.rel (0) target = $region5
    $region4: #{tpu_custom_call.1} parent=1 // pred_region
      %s22 = ssub.s32 128, 128
      %23 = vsyncadd [#allocation4], %s22
      %s25 = sshll.u32 [#allocation3], 4
      %s26 = int_to_ptr.vmem [resolvable:$true] %s25
      %28 = dma.hbm_to_vmem [thread:$0]  %s0, 128, %s26, [#allocation4]
    $region5: #{tpu_custom_call.1} parent=1 // pred_fallthru
      _
    // Predicated region
    $region6: #{tpu_custom_call.1} parent=1 // pred_check
      _
    $region7: #{tpu_custom_call.1} parent=1 // pred_check_branch
      %30 = sbr.rel (0) target = $region9
    $region8: #{tpu_custom_call.1} parent=1 // pred_region
      %s32 = ssub.s32 128, 128
      %33 = vsyncadd [#allocation7], %s32
      %s35 = sshll.u32 [#allocation6], 4
      %s36 = int_to_ptr.vmem [resolvable:$true] %s35
      %38 = dma.hbm_to_vmem [thread:$0]  %s1, 128, %s36, [#allocation7]
    $region9: #{tpu_custom_call.1} parent=1 // pred_fallthru
      _
    // Predicated region
    $region10: #{tpu_custom_call.1} parent=1 // pred_check
      _
    $region11: #{tpu_custom_call.1} parent=1 // pred_check_branch
      %40 = sbr.rel (0) target = $region13
    $region12: #{tpu_custom_call.1} parent=1 // pred_region
      %s42 = ssub.s32 256, 256
      %43 = vsyncadd [#allocation7], %s42
      %s44 = sshll.u32 [#allocation8], 4
      %s45 = int_to_ptr.vmem [resolvable:$true] %s44
      %50 = dma.hbm_to_vmem [thread:$0]  %s2, 256, %s45, [#allocation7], 128, 128, 8
    $region13: #{tpu_custom_call.1} parent=1 // pred_fallthru
      _
    // Predicated region
    $region14: #{tpu_custom_call.1} parent=1 // pred_check
      _
    $region15: #{tpu_custom_call.1} parent=1 // pred_check_branch
      %52 = sbr.rel (0) target = $region17
    $region16: #{tpu_custom_call.1} parent=1 // pred_region
      _
    $region17: #{tpu_custom_call.1} parent=1 // pred_fallthru
      _
    // Predicated region
    $region18: #{tpu_custom_call.1} parent=1 // pred_check
      _
    $region19: #{tpu_custom_call.1} parent=1 // pred_check_branch
      %54 = sbr.rel (0) target = $region21
    $region20: #{tpu_custom_call.1} parent=1 // pred_region
      _
    $region21: #{tpu_custom_call.1} parent=1 // pred_fallthru
      _
    // Predicated region
    $region22: #{tpu_custom_call.1} parent=1 // pred_check
      _
    $region23: #{tpu_custom_call.1} parent=1 // pred_check_branch
      %56 = sbr.rel (0) target = $region25
    $region24: #{tpu_custom_call.1} parent=1 // pred_region
      %s58 = ssub.s32 512, 512
      %59 = vsyncadd [#allocation10], %s58
      %s60 = sshll.u32 [#allocation9], 4
      %s61 = int_to_ptr.vmem [resolvable:$true] %s60
      %66 = dma.hbm_to_vmem [thread:$0]  %s5, 512, %s61, [#allocation10], 128, 128, 8
    $region25: #{tpu_custom_call.1} parent=1 // pred_fallthru
      _
    // Predicated region
    $region26: #{tpu_custom_call.1} parent=1 // pred_check
      _
    $region27: #{tpu_custom_call.1} parent=1 // pred_check_branch
      %68 = sbr.rel (0) target = $region29
    $region28: #{tpu_custom_call.1} parent=1 // pred_region
      _
    $region29: #{tpu_custom_call.1} parent=1 // pred_fallthru
      _
    // Predicated region
    $region30: #{tpu_custom_call.1} parent=1 // pred_check
      _
    $region31: #{tpu_custom_call.1} parent=1 // pred_check_branch
      %70 = sbr.rel (0) target = $region33
    $region32: #{tpu_custom_call.1} parent=1 // pred_region
      _
    $region33: #{tpu_custom_call.1} parent=1 // pred_fallthru
      _
    // Predicated region
    $region34: #{tpu_custom_call.1} parent=1 // pred_check
      _
    $region35: #{tpu_custom_call.1} parent=1 // pred_check_branch
      %72 = sbr.rel (0) target = $region37
    $region36: #{tpu_custom_call.1} parent=1 // pred_region
      _
    $region37: #{tpu_custom_call.1} parent=1 // pred_fallthru
      _
    // Predicated region
    $region38: #{tpu_custom_call.1} parent=1 // pred_check
      _
    $region39: #{tpu_custom_call.1} parent=1 // pred_check_branch
      %74 = sbr.rel (0) target = $region41
    $region40: #{tpu_custom_call.1} parent=1 // pred_region
      %75 = dma.done [#allocation4], 128
    $region41: #{tpu_custom_call.1} parent=1 // pred_fallthru
      _
    // Predicated region
    $region42: #{tpu_custom_call.1} parent=1 // pred_check
      _
    $region43: #{tpu_custom_call.1} parent=1 // pred_check_branch
      %77 = sbr.rel (0) target = $region45
    $region44: #{tpu_custom_call.1} parent=1 // pred_region
      %78 = dma.done [#allocation7], 128
    $region45: #{tpu_custom_call.1} parent=1 // pred_fallthru
      _
    // Predicated region
    $region46: #{tpu_custom_call.1} parent=1 // pred_check
      _
    $region47: #{tpu_custom_call.1} parent=1 // pred_check_branch
      %80 = sbr.rel (0) target = $region49
    $region48: #{tpu_custom_call.1} parent=1 // pred_region
      %81 = dma.done [#allocation7], 256
    $region49: #{tpu_custom_call.1} parent=1 // pred_fallthru
      _
    // Predicated region
    $region50: #{tpu_custom_call.1} parent=1 // pred_check
      _
    $region51: #{tpu_custom_call.1} parent=1 // pred_check_branch
      %83 = sbr.rel (0) target = $region53
    $region52: #{tpu_custom_call.1} parent=1 // pred_region
      %84 = dma.done [#allocation10], 512
    $region53: #{tpu_custom_call.1} parent=1 // pred_fallthru
      _
    %v85 = vld [vmem:[#allocation3] sm:$0xff]
    %v86 = vld [vmem:[#allocation8] sm:$0xff]
    %v87 = vld [vmem:[#allocation8 + $0x8] sm:$0xff]
    %v88 = vld [vmem:[#allocation6] sm:$0xff]
    %v89 = vld [vmem:[%s3] sm:$0xff]
    %vm90 = vcmask 64512
    %v92 = vsel %vm90, %v88, 0
    %94 = vmatprep.subr.mxu0 0.0
    %95 = vmatpush1.msra.mxu0 %v89
    %96 = vmatprep.subr.mxu0 0.0
    %97 = vmatpush1.msra.mxu0 0.0
    %98 = vmatprep.subr.mxu0 0.0
    %99 = vmatpush1.msra.mxu0 0.0
    %100 = vmatprep.subr.mxu0 0.0
    %101 = vmatpush1.msra.mxu0 0.0
    %102 = vmatprep.subr.mxu0 0.0
    %103 = vmatpush1.msra.mxu0 0.0
    %104 = vmatprep.subr.mxu0 0.0
    %105 = vmatpush1.msra.mxu0 0.0
    %106 = vmatprep.subr.mxu0 0.0
    %107 = vmatpush1.msra.mxu0 0.0
    %108 = vmatprep.subr.mxu0 0.0
    %109 = vmatpush1.msra.mxu0 0.0
    %110 = vmatprep.subr.mxu0 0.0
    %111 = vmatpush1.msra.mxu0 0.0
    %112 = vmatprep.subr.mxu0 0.0
    %113 = vmatpush1.msra.mxu0 0.0
    %114 = vmatprep.subr.mxu0 0.0
    %115 = vmatpush1.msra.mxu0 0.0
    %116 = vmatprep.subr.mxu0 0.0
    %117 = vmatpush1.msra.mxu0 0.0
    %118 = vmatprep.subr.mxu0 0.0
    %119 = vmatpush1.msra.mxu0 0.0
    %120 = vmatprep.subr.mxu0 0.0
    %121 = vmatpush1.msra.mxu0 0.0
    %122 = vmatprep.subr.mxu0 0.0
    %123 = vmatpush1.msra.mxu0 0.0
    %124 = vmatprep.subr.mxu0 0.0
    %125 = vmatpush1.msra.mxu0 0.0
    %126 = vmatprep.subr.mxu0 0.0
    %127 = vmatpush1.msra.mxu0 0.0
    %128 = vmatprep.subr.mxu0 0.0
    %129 = vmatpush1.msra.mxu0 0.0
    %130 = vmatprep.subr.mxu0 0.0
    %131 = vmatpush1.msra.mxu0 0.0
    %132 = vmatprep.subr.mxu0 0.0
    %133 = vmatpush1.msra.mxu0 0.0
    %134 = vmatprep.subr.mxu0 0.0
    %135 = vmatpush1.msra.mxu0 0.0
    %136 = vmatprep.subr.mxu0 0.0
    %137 = vmatpush1.msra.mxu0 0.0
    %138 = vmatprep.subr.mxu0 0.0
    %139 = vmatpush1.msra.mxu0 0.0
    %140 = vmatprep.subr.mxu0 0.0
    %141 = vmatpush1.msra.mxu0 0.0
    %142 = vmatprep.subr.mxu0 0.0
    %143 = vmatpush1.msra.mxu0 0.0
    %144 = vmatprep.subr.mxu0 0.0
    %145 = vmatpush1.msra.mxu0 0.0
    %146 = vmatprep.subr.mxu0 0.0
    %147 = vmatpush1.msra.mxu0 0.0
    %148 = vmatprep.subr.mxu0 0.0
    %149 = vmatpush1.msra.mxu0 0.0
    %150 = vmatprep.subr.mxu0 0.0
    %151 = vmatpush1.msra.mxu0 0.0
    %152 = vmatprep.subr.mxu0 0.0
    %153 = vmatpush1.msra.mxu0 0.0
    %154 = vmatprep.subr.mxu0 0.0
    %155 = vmatpush1.msra.mxu0 0.0
    %156 = vmatprep.subr.mxu0 0.0
    %157 = vmatpush1.msra.mxu0 0.0
    %158 = vmatprep.mubr.f32.mxu0 0.0
    %159 = vmatmul.mubr.f32.gmra.mrb[0].mxu0 %v92
    %v160 = vpop.f32.mrb[0].mxu0
    %v161 = vadd.f32 0.0, %v160
    %v162 = vpop.f32.mrb[0].mxu0
    %163 = vdwg.mxu0
    %vm164 = vcmask 130048
    %v166 = vsel %vm164, %v85, 0
    %168 = vmatprep.subr.mxu0 0.0
    %169 = vmatpush1.msra.mxu0 %v86
    %170 = vmatprep.subr.mxu0 0.0
    %171 = vmatpush1.msra.mxu0 %v87
    %172 = vmatprep.subr.mxu0 0.0
    %173 = vmatpush1.msra.mxu0 0.0
    %174 = vmatprep.subr.mxu0 0.0
    %175 = vmatpush1.msra.mxu0 0.0
    %176 = vmatprep.subr.mxu0 0.0
    %177 = vmatpush1.msra.mxu0 0.0
    %178 = vmatprep.subr.mxu0 0.0
    %179 = vmatpush1.msra.mxu0 0.0
    %180 = vmatprep.subr.mxu0 0.0
    %181 = vmatpush1.msra.mxu0 0.0
    %182 = vmatprep.subr.mxu0 0.0
    %183 = vmatpush1.msra.mxu0 0.0
    %184 = vmatprep.subr.mxu0 0.0
    %185 = vmatpush1.msra.mxu0 0.0
    %186 = vmatprep.subr.mxu0 0.0
    %187 = vmatpush1.msra.mxu0 0.0
    %188 = vmatprep.subr.mxu0 0.0
    %189 = vmatpush1.msra.mxu0 0.0
    %190 = vmatprep.subr.mxu0 0.0
    %191 = vmatpush1.msra.mxu0 0.0
    %192 = vmatprep.subr.mxu0 0.0
    %193 = vmatpush1.msra.mxu0 0.0
    %194 = vmatprep.subr.mxu0 0.0
    %195 = vmatpush1.msra.mxu0 0.0
    %196 = vmatprep.subr.mxu0 0.0
    %197 = vmatpush1.msra.mxu0 0.0
    %198 = vmatprep.subr.mxu0 0.0
    %199 = vmatpush1.msra.mxu0 0.0
    %200 = vmatprep.subr.mxu0 0.0
    %201 = vmatpush1.msra.mxu0 0.0
    %202 = vmatprep.subr.mxu0 0.0
    %203 = vmatpush1.msra.mxu0 0.0
    %204 = vmatprep.subr.mxu0 0.0
    %205 = vmatpush1.msra.mxu0 0.0
    %206 = vmatprep.subr.mxu0 0.0
    %207 = vmatpush1.msra.mxu0 0.0
    %208 = vmatprep.subr.mxu0 0.0
    %209 = vmatpush1.msra.mxu0 0.0
    %210 = vmatprep.subr.mxu0 0.0
    %211 = vmatpush1.msra.mxu0 0.0
    %212 = vmatprep.subr.mxu0 0.0
    %213 = vmatpush1.msra.mxu0 0.0
    %214 = vmatprep.subr.mxu0 0.0
    %215 = vmatpush1.msra.mxu0 0.0
    %216 = vmatprep.subr.mxu0 0.0
    %217 = vmatpush1.msra.mxu0 0.0
    %218 = vmatprep.subr.mxu0 0.0
    %219 = vmatpush1.msra.mxu0 0.0
    %220 = vmatprep.subr.mxu0 0.0
    %221 = vmatpush1.msra.mxu0 0.0
    %222 = vmatprep.subr.mxu0 0.0
    %223 = vmatpush1.msra.mxu0 0.0
    %224 = vmatprep.subr.mxu0 0.0
    %225 = vmatpush1.msra.mxu0 0.0
    %226 = vmatprep.subr.mxu0 0.0
    %227 = vmatpush1.msra.mxu0 0.0
    %228 = vmatprep.subr.mxu0 0.0
    %229 = vmatpush1.msra.mxu0 0.0
    %230 = vmatprep.subr.mxu0 0.0
    %231 = vmatpush1.msra.mxu0 0.0
    %232 = vmatprep.mubr.f32.mxu0 0.0
    %233 = vmatmul.mubr.f32.gmra.mrb[0].mxu0 %v166
    %v234 = vpop.f32.mrb[0].mxu0
    %v235 = vadd.f32 %v161, %v234
    %v236 = vpop.f32.mrb[0].mxu0
    %237 = vdwg.mxu0
    %v238 = vld [vmem:[%s4] sm:$0x1]
    %v240 = vlaneseq
    %v241 = vshrl.u32 %v240, 7
    %v242 = vsub.s32 0, %v241
    %v243 = vrot.slane %v238, %v242
    %v245 = vadd.f32 %v235, %v243
    %v246 = vmax.f32 %v245, 0.0
    %v247 = vld [vmem:[#allocation9] sm:$0xff]
    %v248 = vld [vmem:[#allocation9 + $0x8] sm:$0xff]
    %v249 = vld [vmem:[#allocation9 + $0x10] sm:$0xff]
    %v250 = vld [vmem:[#allocation9 + $0x18] sm:$0xff]
    %v251 = vld [vmem:[%s6] sm:$0x1]
    %v253 = vlaneseq
    %v254 = vshrl.u32 %v253, 7
    %v255 = vsub.s32 0, %v254
    %v256 = vrot.slane %v251, %v255
    %vm258 = vcmask 261120
    %v260 = vsel %vm258, %v246, 0
    %262 = vmatprep.subr.mxu0 0.0
    %263 = vmatpush1.msra.mxu0 %v247
    %264 = vmatprep.subr.mxu0 0.0
    %265 = vmatpush1.msra.mxu0 %v248
    %266 = vmatprep.subr.mxu0 0.0
    %267 = vmatpush1.msra.mxu0 %v249
    %268 = vmatprep.subr.mxu0 0.0
    %269 = vmatpush1.msra.mxu0 %v250
    %270 = vmatprep.subr.mxu0 0.0
    %271 = vmatpush1.msra.mxu0 0.0
    %272 = vmatprep.subr.mxu0 0.0
    %273 = vmatpush1.msra.mxu0 0.0
    %274 = vmatprep.subr.mxu0 0.0
    %275 = vmatpush1.msra.mxu0 0.0
    %276 = vmatprep.subr.mxu0 0.0
    %277 = vmatpush1.msra.mxu0 0.0
    %278 = vmatprep.subr.mxu0 0.0
    %279 = vmatpush1.msra.mxu0 0.0
    %280 = vmatprep.subr.mxu0 0.0
    %281 = vmatpush1.msra.mxu0 0.0
    %282 = vmatprep.subr.mxu0 0.0
    %283 = vmatpush1.msra.mxu0 0.0
    %284 = vmatprep.subr.mxu0 0.0
    %285 = vmatpush1.msra.mxu0 0.0
    %286 = vmatprep.subr.mxu0 0.0
    %287 = vmatpush1.msra.mxu0 0.0
    %288 = vmatprep.subr.mxu0 0.0
    %289 = vmatpush1.msra.mxu0 0.0
    %290 = vmatprep.subr.mxu0 0.0
    %291 = vmatpush1.msra.mxu0 0.0
    %292 = vmatprep.subr.mxu0 0.0
    %293 = vmatpush1.msra.mxu0 0.0
    %294 = vmatprep.subr.mxu0 0.0
    %295 = vmatpush1.msra.mxu0 0.0
    %296 = vmatprep.subr.mxu0 0.0
    %297 = vmatpush1.msra.mxu0 0.0
    %298 = vmatprep.subr.mxu0 0.0
    %299 = vmatpush1.msra.mxu0 0.0
    %300 = vmatprep.subr.mxu0 0.0
    %301 = vmatpush1.msra.mxu0 0.0
    %302 = vmatprep.subr.mxu0 0.0
    %303 = vmatpush1.msra.mxu0 0.0
    %304 = vmatprep.subr.mxu0 0.0
    %305 = vmatpush1.msra.mxu0 0.0
    %306 = vmatprep.subr.mxu0 0.0
    %307 = vmatpush1.msra.mxu0 0.0
    %308 = vmatprep.subr.mxu0 0.0
    %309 = vmatpush1.msra.mxu0 0.0
    %310 = vmatprep.subr.mxu0 0.0
    %311 = vmatpush1.msra.mxu0 0.0
    %312 = vmatprep.subr.mxu0 0.0
    %313 = vmatpush1.msra.mxu0 0.0
    %314 = vmatprep.subr.mxu0 0.0
    %315 = vmatpush1.msra.mxu0 0.0
    %316 = vmatprep.subr.mxu0 0.0
    %317 = vmatpush1.msra.mxu0 0.0
    %318 = vmatprep.subr.mxu0 0.0
    %319 = vmatpush1.msra.mxu0 0.0
    %320 = vmatprep.subr.mxu0 0.0
    %321 = vmatpush1.msra.mxu0 0.0
    %322 = vmatprep.subr.mxu0 0.0
    %323 = vmatpush1.msra.mxu0 0.0
    %324 = vmatprep.subr.mxu0 0.0
    %325 = vmatpush1.msra.mxu0 0.0
    %326 = vmatprep.mubr.f32.mxu0 0.0
    %327 = vmatmul.mubr.f32.gmra.mrb[0].mxu0 %v260
    %v328 = vpop.f32.mrb[0].mxu0
    %v329 = vadd.f32 %v256, %v328
    %v330 = vpop.f32.mrb[0].mxu0
    %331 = vdwg.mxu0
    %v332 = vmax.f32 %v329, 0.0
    %v333 = vld [vmem:[%s7] sm:$0x1]
    %s334 = sld [smem:[#allocation2]]
    %v335 = vstv %s334
    %v337 = vsel %vm258, %v333, 0
    %v340 = vsel %vm258, %v332, 0
    %342 = vmatprep.subr.mxu0 0.0
    %343 = vmatpush1.xpose.msra.mxu0 %v340
    %344 = vmatprep.subr.mxu0 0.0
    %345 = vmatpush1.xpose.msra.mxu0 0.0
    %346 = vmatprep.subr.mxu0 0.0
    %347 = vmatpush1.xpose.msra.mxu0 0.0
    %348 = vmatprep.subr.mxu0 0.0
    %349 = vmatpush1.xpose.msra.mxu0 0.0
    %350 = vmatprep.subr.mxu0 0.0
    %351 = vmatpush1.xpose.msra.mxu0 0.0
    %352 = vmatprep.subr.mxu0 0.0
    %353 = vmatpush1.xpose.msra.mxu0 0.0
    %354 = vmatprep.subr.mxu0 0.0
    %355 = vmatpush1.xpose.msra.mxu0 0.0
    %356 = vmatprep.subr.mxu0 0.0
    %357 = vmatpush1.xpose.msra.mxu0 0.0
    %358 = vmatprep.subr.mxu0 0.0
    %359 = vmatpush1.xpose.msra.mxu0 0.0
    %360 = vmatprep.subr.mxu0 0.0
    %361 = vmatpush1.xpose.msra.mxu0 0.0
    %362 = vmatprep.subr.mxu0 0.0
    %363 = vmatpush1.xpose.msra.mxu0 0.0
    %364 = vmatprep.subr.mxu0 0.0
    %365 = vmatpush1.xpose.msra.mxu0 0.0
    %366 = vmatprep.subr.mxu0 0.0
    %367 = vmatpush1.xpose.msra.mxu0 0.0
    %368 = vmatprep.subr.mxu0 0.0
    %369 = vmatpush1.xpose.msra.mxu0 0.0
    %370 = vmatprep.subr.mxu0 0.0
    %371 = vmatpush1.xpose.msra.mxu0 0.0
    %372 = vmatprep.subr.mxu0 0.0
    %373 = vmatpush1.xpose.msra.mxu0 0.0
    %374 = vmatprep.subr.mxu0 0.0
    %375 = vmatpush1.xpose.msra.mxu0 0.0
    %376 = vmatprep.subr.mxu0 0.0
    %377 = vmatpush1.xpose.msra.mxu0 0.0
    %378 = vmatprep.subr.mxu0 0.0
    %379 = vmatpush1.xpose.msra.mxu0 0.0
    %380 = vmatprep.subr.mxu0 0.0
    %381 = vmatpush1.xpose.msra.mxu0 0.0
    %382 = vmatprep.subr.mxu0 0.0
    %383 = vmatpush1.xpose.msra.mxu0 0.0
    %384 = vmatprep.subr.mxu0 0.0
    %385 = vmatpush1.xpose.msra.mxu0 0.0
    %386 = vmatprep.subr.mxu0 0.0
    %387 = vmatpush1.xpose.msra.mxu0 0.0
    %388 = vmatprep.subr.mxu0 0.0
    %389 = vmatpush1.xpose.msra.mxu0 0.0
    %390 = vmatprep.subr.mxu0 0.0
    %391 = vmatpush1.xpose.msra.mxu0 0.0
    %392 = vmatprep.subr.mxu0 0.0
    %393 = vmatpush1.xpose.msra.mxu0 0.0
    %394 = vmatprep.subr.mxu0 0.0
    %395 = vmatpush1.xpose.msra.mxu0 0.0
    %396 = vmatprep.subr.mxu0 0.0
    %397 = vmatpush1.xpose.msra.mxu0 0.0
    %398 = vmatprep.subr.mxu0 0.0
    %399 = vmatpush1.xpose.msra.mxu0 0.0
    %400 = vmatprep.subr.mxu0 0.0
    %401 = vmatpush1.xpose.msra.mxu0 0.0
    %402 = vmatprep.subr.mxu0 0.0
    %403 = vmatpush1.xpose.msra.mxu0 0.0
    %404 = vmatprep.subr.mxu0 0.0
    %405 = vmatpush1.xpose.msra.mxu0 0.0
    %406 = vmatprep.mubr.f32.mxu0 0.0
    %407 = vmatmul.mubr.f32.gmra.mrb[0].mxu0 %v337
    %v408 = vpop.f32.mrb[0].mxu0
    %v409 = vadd.f32 %v335, %v408
    %v410 = vpop.f32.mrb[0].mxu0
    %411 = vdwg.mxu0
    %vm412 = vcmask 57344
    %413 = vst.msk [vmem:[#allocation11] sm:$0x1] %vm412, %v409
    // Predicated region
    $region54: #{tpu_custom_call.1} parent=1 // pred_check
      _
    $region55: #{tpu_custom_call.1} parent=1 // pred_check_branch
      %415 = sbr.rel (0) target = $region57
    $region56: #{tpu_custom_call.1} parent=1 // pred_region
      %s417 = ssub.s32 16, 16
      %418 = vsyncadd [#allocation5], %s417
      %s420 = sshll.u32 [#allocation11], 4
      %s421 = int_to_ptr.vmem [resolvable:$true] %s420
      %423 = dma.vmem_to_hbm [thread:$0]  %s421, 16, %s9, [#allocation5]
    $region57: #{tpu_custom_call.1} parent=1 // pred_fallthru
      _
    // Predicated region
    $region58: #{tpu_custom_call.1} parent=1 // pred_check
      _
    $region59: #{tpu_custom_call.1} parent=1 // pred_check_branch
      %425 = sbr.rel (0) target = $region61
    $region60: #{tpu_custom_call.1} parent=1 // pred_region
      %426 = dma.done [#allocation5], 16
    $region61: #{tpu_custom_call.1} parent=1 // pred_fallthru
      _
    %427 = vsyncpa [#allocation4], 1
    %428 = vsyncpa [#allocation7], 1
    %429 = vsyncpa [#allocation10], 1
    %430 = vsyncpa [#allocation5], 1

</llo_original>
